<compile_context>
chip_gen: v6e
topology: v6e:2x2x1
jax: 0.10.0
libtpu: 0.0.40
codegen_flags: <defaults>
</compile_context>

<pallas_src>
import jax
import jax.numpy as jnp
from jax.experimental import pallas as pl
from jax.experimental.pallas import tpu as pltpu


def _sigmoid(v):
    return 1.0 / (1.0 + jnp.exp(-v))


def lstm_encoder_kernel(xt_ref, embt_ref, wc_ref, bc_ref, wih_ref, whh_ref,
                        bih_ref, bhh_ref, out_ref,
                        gi_ref, gf_ref, gg_ref, go_ref):
    # xt_ref   : (L, TB) int32  tokens, batch along lanes
    # embt_ref : (A, A)  f32    transposed embedding table, embt[a', a] = E[a, a']
    # wc_ref   : (N, L)  f32    Conv1d (kernel_size=1) weight
    # bc_ref   : (N, 1)  f32    Conv1d bias
    # wih_ref  : (4, A)  f32    LSTM weight_ih (gate order i, f, g, o)
    # whh_ref  : (1, 4)  f32    LSTM weight_hh (hidden_size = 1)
    # bih_ref  : (1, 4)  f32    LSTM bias_ih
    # bhh_ref  : (1, 4)  f32    LSTM bias_hh
    # out_ref  : (N, TB) f32    h_t for every step (hidden size 1)
    # g*_ref   : (N, TB) f32    scratch: per-gate input pre-activations
    L, TB = xt_ref.shape
    A = embt_ref.shape[0]
    N = wc_ref.shape[0]

    idx = xt_ref[...]                                   # (L, TB)
    wc = wc_ref[...]                                    # (N, L)
    bc = bc_ref[...]                                    # (N, 1)
    wih = wih_ref[...]                                  # (4, A)
    bias = bih_ref[...] + bhh_ref[...]                  # (1, 4)

    # P[g, a] = sum_a' W_ih[g, a'] * E[a, a']  (embedding row 'a' projected
    # onto the 4 gates).  The alphabet is tiny, so unroll on the VPU.
    p = jnp.zeros((4, A), jnp.float32)
    for ap in range(A):
        p = p + wih[:, ap:ap + 1] * embt_ref[ap:ap + 1, :]

    # The conv bias reaches gate g through sum_a W_ih[g, a].
    s = jnp.sum(wih, axis=1, keepdims=True)             # (4, 1)

    # One-hot embedding lookup as compare masks (A is small by construction).
    masks = [(idx == a).astype(jnp.float32) for a in range(A)]   # each (L, TB)

    gate_refs = (gi_ref, gf_ref, gg_ref, go_ref)
    for g in range(4):
        # q[l, b] = P[g, x[b, l]]
        q = jnp.zeros((L, TB), jnp.float32)
        for a in range(A):
            q = q + masks[a] * p[g:g + 1, a:a + 1]
        # zx[n, b] = sum_l Wc[n, l] * q[l, b] + bc[n]*s[g] + b_ih[g] + b_hh[g]
        zx = jnp.dot(wc, q, preferred_element_type=jnp.float32)   # MXU
        zx = zx + bc * s[g:g + 1, :] + bias[:, g:g + 1]
        gate_refs[g][...] = zx

    # ---- sequential LSTM recurrence over the code dimension (hidden = 1) ----
    whh = whh_ref[...]                                  # (1, 4)

    def step(n, carry):
        h, c = carry                                    # (1, TB) each
        zi = gi_ref[pl.ds(n, 1), :] + whh[:, 0:1] * h
        zf = gf_ref[pl.ds(n, 1), :] + whh[:, 1:2] * h
        zg = gg_ref[pl.ds(n, 1), :] + whh[:, 2:3] * h
        zo = go_ref[pl.ds(n, 1), :] + whh[:, 3:4] * h
        i_t = _sigmoid(zi)
        f_t = _sigmoid(zf)
        g_t = jnp.tanh(zg)
        o_t = _sigmoid(zo)
        c = f_t * c + i_t * g_t
        h = o_t * jnp.tanh(c)
        out_ref[pl.ds(n, 1), :] = h                     # dense (1, TB) row store
        return h, c

    zero = jnp.zeros((1, TB), jnp.float32)
    jax.lax.fori_loop(0, N, step, (zero, zero))


def lstm_encoder_forward(x, emb_w, conv_w, conv_b, w_ih, w_hh, b_ih, b_hh,
                         *, batch_tile=512):
    """Pallas forward of LSTMEncoder.  Returns (B, code_length, 1) float32."""
    B, L = x.shape
    A = emb_w.shape[0]
    conv_w = conv_w.reshape(conv_w.shape[0], L)
    N = conv_w.shape[0]

    # Layout plumbing only (no compute): batch goes on the lane dimension.
    xt = jnp.asarray(x, jnp.int32).T                       # (L, B)
    embt = jnp.asarray(emb_w, jnp.float32).T               # (A, A)
    wc = jnp.asarray(conv_w, jnp.float32)                  # (N, L)
    bc = jnp.asarray(conv_b, jnp.float32).reshape(N, 1)    # (N, 1)
    wih = jnp.asarray(w_ih, jnp.float32)                   # (4, A)
    whh = jnp.asarray(w_hh, jnp.float32).reshape(1, 4)     # (1, 4)
    bih = jnp.asarray(b_ih, jnp.float32).reshape(1, 4)
    bhh = jnp.asarray(b_hh, jnp.float32).reshape(1, 4)

    # Single grid step for small batches; lane-aligned tiles + a parallel
    # batch axis (shards across both v7x TensorCores) for large batches.
    if B <= batch_tile:
        tb = B
        bp = B
    else:
        tb = batch_tile                                    # multiple of 128
        bp = pl.cdiv(B, tb) * tb
        if bp != B:
            xt = jnp.pad(xt, ((0, 0), (0, bp - B)))        # pad with token 0
    grid = (bp // tb,)

    out = pl.pallas_call(
        lstm_encoder_kernel,
        out_shape=jax.ShapeDtypeStruct((N, bp), jnp.float32),
        grid_spec=pltpu.PrefetchScalarGridSpec(
            num_scalar_prefetch=0,
            grid=grid,
            in_specs=[
                pl.BlockSpec((L, tb), lambda i: (0, i)),   # tokens (batch tile)
                pl.BlockSpec((A, A), lambda i: (0, 0)),    # embedding (resident)
                pl.BlockSpec((N, L), lambda i: (0, 0)),    # conv weight
                pl.BlockSpec((N, 1), lambda i: (0, 0)),    # conv bias
                pl.BlockSpec((4, A), lambda i: (0, 0)),    # LSTM W_ih
                pl.BlockSpec((1, 4), lambda i: (0, 0)),    # LSTM W_hh
                pl.BlockSpec((1, 4), lambda i: (0, 0)),    # LSTM b_ih
                pl.BlockSpec((1, 4), lambda i: (0, 0)),    # LSTM b_hh
            ],
            out_specs=pl.BlockSpec((N, tb), lambda i: (0, i)),
            scratch_shapes=[pltpu.VMEM((N, tb), jnp.float32) for _ in range(4)],
        ),
        compiler_params=pltpu.CompilerParams(
            dimension_semantics=("parallel",)),
    )(xt, embt, wc, bc, wih, whh, bih, bhh)

    # (N, Bp) -> (B, N, 1), dropping any batch padding.
    return out[:, :B].T[:, :, None]


def lstm_encoder_reference(x, emb_w, conv_w, conv_b, w_ih, w_hh, b_ih, b_hh):
    """Pure-JAX mirror of the PyTorch module, for checking."""
    hp = jax.lax.Precision.HIGHEST
    e = emb_w[x]                                                  # (B, L, A)
    wc = conv_w.reshape(conv_w.shape[0], x.shape[1])
    hidden = (jnp.einsum("nl,bla->bna", wc, e, precision=hp)
              + conv_b[None, :, None])                            # (B, N, A)
    Bn = hidden.shape[0]

    def cell(carry, x_t):                                         # x_t: (B, A)
        h, c = carry                                              # (B, 1)
        z = (jnp.dot(x_t, w_ih.T, precision=hp) + b_ih
             + jnp.dot(h, w_hh.T, precision=hp) + b_hh)           # (B, 4)
        i = jax.nn.sigmoid(z[:, 0:1])
        f = jax.nn.sigmoid(z[:, 1:2])
        g = jnp.tanh(z[:, 2:3])
        o = jax.nn.sigmoid(z[:, 3:4])
        c = f * c + i * g
        h = o * jnp.tanh(c)
        return (h, c), h

    init = (jnp.zeros((Bn, 1), jnp.float32), jnp.zeros((Bn, 1), jnp.float32))
    _, hs = jax.lax.scan(cell, init, jnp.swapaxes(hidden, 0, 1))  # (N, B, 1)
    return jnp.transpose(hs, (1, 0, 2))                           # (B, N, 1)


if __name__ == "__main__":
    # Small shapes consistent with the module:
    # alphabet_size=4, message_length=8, code_length=16, batch=2.
    A, L, N, B = 4, 8, 16, 2

    key = jax.random.PRNGKey(0)
    ks = jax.random.split(key, 8)
    x = jax.random.randint(ks[0], (B, L), 0, A, dtype=jnp.int32)
    emb_w = jax.random.normal(ks[1], (A, A), jnp.float32)
    conv_w = 0.3 * jax.random.normal(ks[2], (N, L), jnp.float32)
    conv_b = 0.1 * jax.random.normal(ks[3], (N,), jnp.float32)
    w_ih = 0.5 * jax.random.normal(ks[4], (4, A), jnp.float32)
    w_hh = 0.5 * jax.random.normal(ks[5], (4, 1), jnp.float32)
    b_ih = 0.1 * jax.random.normal(ks[6], (4,), jnp.float32)
    b_hh = 0.1 * jax.random.normal(ks[7], (4,), jnp.float32)

    out = lstm_encoder_forward(x, emb_w, conv_w, conv_b, w_ih, w_hh, b_ih, b_hh)
    out = jax.block_until_ready(out)

    ref = lstm_encoder_reference(x, emb_w, conv_w, conv_b, w_ih, w_hh, b_ih, b_hh)

    assert out.shape == (B, N, 1), out.shape
    assert jnp.allclose(out, ref, atol=1e-4, rtol=1e-4), (
        float(jnp.max(jnp.abs(out - ref))))
    print("KERNEL_OK")
</pallas_src>

<mosaic_0001>
module attributes {stable_mosaic.version = 11 : i64} {
  func.func @lstm_encoder_kernel(%arg0: i32, %arg1: memref<8x2xi32, #tpu.memory_space<vmem>>, %arg2: memref<4x4xf32, #tpu.memory_space<vmem>>, %arg3: memref<16x8xf32, #tpu.memory_space<vmem>>, %arg4: memref<16x1xf32, #tpu.memory_space<vmem>>, %arg5: memref<4x4xf32, #tpu.memory_space<vmem>>, %arg6: memref<1x4xf32, #tpu.memory_space<vmem>>, %arg7: memref<1x4xf32, #tpu.memory_space<vmem>>, %arg8: memref<1x4xf32, #tpu.memory_space<vmem>>, %arg9: memref<16x2xf32, #tpu.memory_space<vmem>>, %arg10: memref<16x2xf32, #tpu.memory_space<vmem>>, %arg11: memref<16x2xf32, #tpu.memory_space<vmem>>, %arg12: memref<16x2xf32, #tpu.memory_space<vmem>>, %arg13: memref<16x2xf32, #tpu.memory_space<vmem>>) attributes {dimension_semantics = [#tpu.dimension_semantics<parallel>], iteration_bounds = array<i64: 1>, scalar_prefetch = 0 : i64, scratch_operands = 4 : i64, tpu.core_type = #tpu.core_type<tc>, window_params = [{transform_indices = @transform_0, window_bounds = array<i64: 8, 2>}, {pipeline_mode = #tpu.pipeline_mode<synchronous>, transform_indices = @transform_1, window_bounds = array<i64: 4, 4>}, {pipeline_mode = #tpu.pipeline_mode<synchronous>, transform_indices = @transform_2, window_bounds = array<i64: 16, 8>}, {pipeline_mode = #tpu.pipeline_mode<synchronous>, transform_indices = @transform_3, window_bounds = array<i64: 16, 1>}, {pipeline_mode = #tpu.pipeline_mode<synchronous>, transform_indices = @transform_4, window_bounds = array<i64: 4, 4>}, {pipeline_mode = #tpu.pipeline_mode<synchronous>, transform_indices = @transform_5, window_bounds = array<i64: 1, 4>}, {pipeline_mode = #tpu.pipeline_mode<synchronous>, transform_indices = @transform_6, window_bounds = array<i64: 1, 4>}, {pipeline_mode = #tpu.pipeline_mode<synchronous>, transform_indices = @transform_7, window_bounds = array<i64: 1, 4>}, {transform_indices = @transform_8, window_bounds = array<i64: 16, 2>}]} {
    %c0 = arith.constant 0 : index
    %c0_0 = arith.constant 0 : index
    %0 = vector.load %arg1[%c0, %c0_0] : memref<8x2xi32, #tpu.memory_space<vmem>>, vector<8x2xi32>
    %c0_1 = arith.constant 0 : index
    %c0_2 = arith.constant 0 : index
    %1 = vector.load %arg3[%c0_1, %c0_2] : memref<16x8xf32, #tpu.memory_space<vmem>>, vector<16x8xf32>
    %c0_3 = arith.constant 0 : index
    %c0_4 = arith.constant 0 : index
    %2 = vector.load %arg4[%c0_3, %c0_4] : memref<16x1xf32, #tpu.memory_space<vmem>>, vector<16x1xf32>
    %c0_5 = arith.constant 0 : index
    %c0_6 = arith.constant 0 : index
    %3 = vector.load %arg5[%c0_5, %c0_6] : memref<4x4xf32, #tpu.memory_space<vmem>>, vector<4x4xf32>
    %c0_7 = arith.constant 0 : index
    %c0_8 = arith.constant 0 : index
    %4 = vector.load %arg7[%c0_7, %c0_8] : memref<1x4xf32, #tpu.memory_space<vmem>>, vector<1x4xf32>
    %c0_9 = arith.constant 0 : index
    %c0_10 = arith.constant 0 : index
    %5 = vector.load %arg8[%c0_9, %c0_10] : memref<1x4xf32, #tpu.memory_space<vmem>>, vector<1x4xf32>
    %6 = arith.addf %4, %5 : vector<1x4xf32>
    %cst = arith.constant 0.000000e+00 : f32
    %7 = vector.broadcast %cst : f32 to vector<4x4xf32>
    %8 = vector.extract_strided_slice %3 {offsets = [0, 0], sizes = [4, 1], strides = [1, 1]} : vector<4x4xf32> to vector<4x1xf32>
    %c0_11 = arith.constant 0 : index
    %c0_12 = arith.constant 0 : index
    %9 = vector.load %arg2[%c0_11, %c0_12] : memref<4x4xf32, #tpu.memory_space<vmem>>, vector<1x4xf32>
    %10 = vector.broadcast %8 : vector<4x1xf32> to vector<4x4xf32>
    %11 = vector.broadcast %9 : vector<1x4xf32> to vector<4x4xf32>
    %12 = arith.mulf %10, %11 : vector<4x4xf32>
    %13 = arith.addf %7, %12 : vector<4x4xf32>
    %14 = vector.extract_strided_slice %3 {offsets = [0, 1], sizes = [4, 1], strides = [1, 1]} : vector<4x4xf32> to vector<4x1xf32>
    %c1 = arith.constant 1 : index
    %c0_13 = arith.constant 0 : index
    %15 = vector.load %arg2[%c1, %c0_13] : memref<4x4xf32, #tpu.memory_space<vmem>>, vector<1x4xf32>
    %16 = vector.broadcast %14 : vector<4x1xf32> to vector<4x4xf32>
    %17 = vector.broadcast %15 : vector<1x4xf32> to vector<4x4xf32>
    %18 = arith.mulf %16, %17 : vector<4x4xf32>
    %19 = arith.addf %13, %18 : vector<4x4xf32>
    %20 = vector.extract_strided_slice %3 {offsets = [0, 2], sizes = [4, 1], strides = [1, 1]} : vector<4x4xf32> to vector<4x1xf32>
    %c2 = arith.constant 2 : index
    %c0_14 = arith.constant 0 : index
    %21 = vector.load %arg2[%c2, %c0_14] : memref<4x4xf32, #tpu.memory_space<vmem>>, vector<1x4xf32>
    %22 = vector.broadcast %20 : vector<4x1xf32> to vector<4x4xf32>
    %23 = vector.broadcast %21 : vector<1x4xf32> to vector<4x4xf32>
    %24 = arith.mulf %22, %23 : vector<4x4xf32>
    %25 = arith.addf %19, %24 : vector<4x4xf32>
    %26 = vector.extract_strided_slice %3 {offsets = [0, 3], sizes = [4, 1], strides = [1, 1]} : vector<4x4xf32> to vector<4x1xf32>
    %c3 = arith.constant 3 : index
    %c0_15 = arith.constant 0 : index
    %27 = vector.load %arg2[%c3, %c0_15] : memref<4x4xf32, #tpu.memory_space<vmem>>, vector<1x4xf32>
    %28 = vector.broadcast %26 : vector<4x1xf32> to vector<4x4xf32>
    %29 = vector.broadcast %27 : vector<1x4xf32> to vector<4x4xf32>
    %30 = arith.mulf %28, %29 : vector<4x4xf32>
    %31 = arith.addf %25, %30 : vector<4x4xf32>
    %cst_16 = arith.constant dense<0.000000e+00> : vector<4xf32>
    %32 = vector.multi_reduction <add>, %3, %cst_16 [1] : vector<4x4xf32> to vector<4xf32>
    %33 = vector.shape_cast %32 : vector<4xf32> to vector<4x1xf32>
    %c0_i32 = arith.constant 0 : i32
    %34 = vector.broadcast %c0_i32 : i32 to vector<8x2xi32>
    %35 = arith.cmpi eq, %0, %34 : vector<8x2xi32>
    %36 = arith.extui %35 : vector<8x2xi1> to vector<8x2xi32>
    %37 = arith.sitofp %36 : vector<8x2xi32> to vector<8x2xf32>
    %c1_i32 = arith.constant 1 : i32
    %38 = vector.broadcast %c1_i32 : i32 to vector<8x2xi32>
    %39 = arith.cmpi eq, %0, %38 : vector<8x2xi32>
    %40 = arith.extui %39 : vector<8x2xi1> to vector<8x2xi32>
    %41 = arith.sitofp %40 : vector<8x2xi32> to vector<8x2xf32>
    %c2_i32 = arith.constant 2 : i32
    %42 = vector.broadcast %c2_i32 : i32 to vector<8x2xi32>
    %43 = arith.cmpi eq, %0, %42 : vector<8x2xi32>
    %44 = arith.extui %43 : vector<8x2xi1> to vector<8x2xi32>
    %45 = arith.sitofp %44 : vector<8x2xi32> to vector<8x2xf32>
    %c3_i32 = arith.constant 3 : i32
    %46 = vector.broadcast %c3_i32 : i32 to vector<8x2xi32>
    %47 = arith.cmpi eq, %0, %46 : vector<8x2xi32>
    %48 = arith.extui %47 : vector<8x2xi1> to vector<8x2xi32>
    %49 = arith.sitofp %48 : vector<8x2xi32> to vector<8x2xf32>
    %cst_17 = arith.constant 0.000000e+00 : f32
    %50 = vector.broadcast %cst_17 : f32 to vector<8x2xf32>
    %51 = vector.extract_strided_slice %31 {offsets = [0, 0], sizes = [1, 1], strides = [1, 1]} : vector<4x4xf32> to vector<1x1xf32>
    %52 = vector.broadcast %51 : vector<1x1xf32> to vector<8x2xf32>
    %53 = arith.mulf %37, %52 : vector<8x2xf32>
    %54 = arith.addf %50, %53 : vector<8x2xf32>
    %55 = vector.extract_strided_slice %31 {offsets = [0, 1], sizes = [1, 1], strides = [1, 1]} : vector<4x4xf32> to vector<1x1xf32>
    %56 = vector.broadcast %55 : vector<1x1xf32> to vector<8x2xf32>
    %57 = arith.mulf %41, %56 : vector<8x2xf32>
    %58 = arith.addf %54, %57 : vector<8x2xf32>
    %59 = vector.extract_strided_slice %31 {offsets = [0, 2], sizes = [1, 1], strides = [1, 1]} : vector<4x4xf32> to vector<1x1xf32>
    %60 = vector.broadcast %59 : vector<1x1xf32> to vector<8x2xf32>
    %61 = arith.mulf %45, %60 : vector<8x2xf32>
    %62 = arith.addf %58, %61 : vector<8x2xf32>
    %63 = vector.extract_strided_slice %31 {offsets = [0, 3], sizes = [1, 1], strides = [1, 1]} : vector<4x4xf32> to vector<1x1xf32>
    %64 = vector.broadcast %63 : vector<1x1xf32> to vector<8x2xf32>
    %65 = arith.mulf %49, %64 : vector<8x2xf32>
    %66 = arith.addf %62, %65 : vector<8x2xf32>
    %cst_18 = arith.constant dense<0.000000e+00> : vector<16x2xf32>
    %67 = tpu.matmul %1, %66, %cst_18 {dimension_numbers = #tpu.dot_dimension_numbers<[1], [0], [0], [1], [0, 0, 1, 1], [], []>} : vector<16x8xf32>, vector<8x2xf32>, vector<16x2xf32> -> vector<16x2xf32>
    %68 = vector.extract_strided_slice %33 {offsets = [0, 0], sizes = [1, 1], strides = [1, 1]} : vector<4x1xf32> to vector<1x1xf32>
    %69 = vector.broadcast %68 : vector<1x1xf32> to vector<16x1xf32>
    %70 = arith.mulf %2, %69 : vector<16x1xf32>
    %71 = vector.broadcast %70 : vector<16x1xf32> to vector<16x2xf32>
    %72 = arith.addf %67, %71 : vector<16x2xf32>
    %73 = vector.extract_strided_slice %6 {offsets = [0, 0], sizes = [1, 1], strides = [1, 1]} : vector<1x4xf32> to vector<1x1xf32>
    %74 = vector.broadcast %73 : vector<1x1xf32> to vector<16x2xf32>
    %75 = arith.addf %72, %74 : vector<16x2xf32>
    %c0_19 = arith.constant 0 : index
    %c0_20 = arith.constant 0 : index
    %76 = vector.load %arg10[%c0_19, %c0_20] : memref<16x2xf32, #tpu.memory_space<vmem>>, vector<16x2xf32>
    tpu.vector_store %arg10[%c0_19, %c0_20], %75 {strides = array<i32>} : memref<16x2xf32, #tpu.memory_space<vmem>>, vector<16x2xf32>,
    %cst_21 = arith.constant 0.000000e+00 : f32
    %77 = vector.broadcast %cst_21 : f32 to vector<8x2xf32>
    %78 = vector.extract_strided_slice %31 {offsets = [1, 0], sizes = [1, 1], strides = [1, 1]} : vector<4x4xf32> to vector<1x1xf32>
    %79 = vector.broadcast %78 : vector<1x1xf32> to vector<8x2xf32>
    %80 = arith.mulf %37, %79 : vector<8x2xf32>
    %81 = arith.addf %77, %80 : vector<8x2xf32>
    %82 = vector.extract_strided_slice %31 {offsets = [1, 1], sizes = [1, 1], strides = [1, 1]} : vector<4x4xf32> to vector<1x1xf32>
    %83 = vector.broadcast %82 : vector<1x1xf32> to vector<8x2xf32>
    %84 = arith.mulf %41, %83 : vector<8x2xf32>
    %85 = arith.addf %81, %84 : vector<8x2xf32>
    %86 = vector.extract_strided_slice %31 {offsets = [1, 2], sizes = [1, 1], strides = [1, 1]} : vector<4x4xf32> to vector<1x1xf32>
    %87 = vector.broadcast %86 : vector<1x1xf32> to vector<8x2xf32>
    %88 = arith.mulf %45, %87 : vector<8x2xf32>
    %89 = arith.addf %85, %88 : vector<8x2xf32>
    %90 = vector.extract_strided_slice %31 {offsets = [1, 3], sizes = [1, 1], strides = [1, 1]} : vector<4x4xf32> to vector<1x1xf32>
    %91 = vector.broadcast %90 : vector<1x1xf32> to vector<8x2xf32>
    %92 = arith.mulf %49, %91 : vector<8x2xf32>
    %93 = arith.addf %89, %92 : vector<8x2xf32>
    %cst_22 = arith.constant dense<0.000000e+00> : vector<16x2xf32>
    %94 = tpu.matmul %1, %93, %cst_22 {dimension_numbers = #tpu.dot_dimension_numbers<[1], [0], [0], [1], [0, 0, 1, 1], [], []>} : vector<16x8xf32>, vector<8x2xf32>, vector<16x2xf32> -> vector<16x2xf32>
    %95 = vector.extract_strided_slice %33 {offsets = [1, 0], sizes = [1, 1], strides = [1, 1]} : vector<4x1xf32> to vector<1x1xf32>
    %96 = vector.broadcast %95 : vector<1x1xf32> to vector<16x1xf32>
    %97 = arith.mulf %2, %96 : vector<16x1xf32>
    %98 = vector.broadcast %97 : vector<16x1xf32> to vector<16x2xf32>
    %99 = arith.addf %94, %98 : vector<16x2xf32>
    %100 = vector.extract_strided_slice %6 {offsets = [0, 1], sizes = [1, 1], strides = [1, 1]} : vector<1x4xf32> to vector<1x1xf32>
    %101 = vector.broadcast %100 : vector<1x1xf32> to vector<16x2xf32>
    %102 = arith.addf %99, %101 : vector<16x2xf32>
    %c0_23 = arith.constant 0 : index
    %c0_24 = arith.constant 0 : index
    %103 = vector.load %arg11[%c0_23, %c0_24] : memref<16x2xf32, #tpu.memory_space<vmem>>, vector<16x2xf32>
    tpu.vector_store %arg11[%c0_23, %c0_24], %102 {strides = array<i32>} : memref<16x2xf32, #tpu.memory_space<vmem>>, vector<16x2xf32>,
    %cst_25 = arith.constant 0.000000e+00 : f32
    %104 = vector.broadcast %cst_25 : f32 to vector<8x2xf32>
    %105 = vector.extract_strided_slice %31 {offsets = [2, 0], sizes = [1, 1], strides = [1, 1]} : vector<4x4xf32> to vector<1x1xf32>
    %106 = vector.broadcast %105 : vector<1x1xf32> to vector<8x2xf32>
    %107 = arith.mulf %37, %106 : vector<8x2xf32>
    %108 = arith.addf %104, %107 : vector<8x2xf32>
    %109 = vector.extract_strided_slice %31 {offsets = [2, 1], sizes = [1, 1], strides = [1, 1]} : vector<4x4xf32> to vector<1x1xf32>
    %110 = vector.broadcast %109 : vector<1x1xf32> to vector<8x2xf32>
    %111 = arith.mulf %41, %110 : vector<8x2xf32>
    %112 = arith.addf %108, %111 : vector<8x2xf32>
    %113 = vector.extract_strided_slice %31 {offsets = [2, 2], sizes = [1, 1], strides = [1, 1]} : vector<4x4xf32> to vector<1x1xf32>
    %114 = vector.broadcast %113 : vector<1x1xf32> to vector<8x2xf32>
    %115 = arith.mulf %45, %114 : vector<8x2xf32>
    %116 = arith.addf %112, %115 : vector<8x2xf32>
    %117 = vector.extract_strided_slice %31 {offsets = [2, 3], sizes = [1, 1], strides = [1, 1]} : vector<4x4xf32> to vector<1x1xf32>
    %118 = vector.broadcast %117 : vector<1x1xf32> to vector<8x2xf32>
    %119 = arith.mulf %49, %118 : vector<8x2xf32>
    %120 = arith.addf %116, %119 : vector<8x2xf32>
    %cst_26 = arith.constant dense<0.000000e+00> : vector<16x2xf32>
    %121 = tpu.matmul %1, %120, %cst_26 {dimension_numbers = #tpu.dot_dimension_numbers<[1], [0], [0], [1], [0, 0, 1, 1], [], []>} : vector<16x8xf32>, vector<8x2xf32>, vector<16x2xf32> -> vector<16x2xf32>
    %122 = vector.extract_strided_slice %33 {offsets = [2, 0], sizes = [1, 1], strides = [1, 1]} : vector<4x1xf32> to vector<1x1xf32>
    %123 = vector.broadcast %122 : vector<1x1xf32> to vector<16x1xf32>
    %124 = arith.mulf %2, %123 : vector<16x1xf32>
    %125 = vector.broadcast %124 : vector<16x1xf32> to vector<16x2xf32>
    %126 = arith.addf %121, %125 : vector<16x2xf32>
    %127 = vector.extract_strided_slice %6 {offsets = [0, 2], sizes = [1, 1], strides = [1, 1]} : vector<1x4xf32> to vector<1x1xf32>
    %128 = vector.broadcast %127 : vector<1x1xf32> to vector<16x2xf32>
    %129 = arith.addf %126, %128 : vector<16x2xf32>
    %c0_27 = arith.constant 0 : index
    %c0_28 = arith.constant 0 : index
    %130 = vector.load %arg12[%c0_27, %c0_28] : memref<16x2xf32, #tpu.memory_space<vmem>>, vector<16x2xf32>
    tpu.vector_store %arg12[%c0_27, %c0_28], %129 {strides = array<i32>} : memref<16x2xf32, #tpu.memory_space<vmem>>, vector<16x2xf32>,
    %cst_29 = arith.constant 0.000000e+00 : f32
    %131 = vector.broadcast %cst_29 : f32 to vector<8x2xf32>
    %132 = vector.extract_strided_slice %31 {offsets = [3, 0], sizes = [1, 1], strides = [1, 1]} : vector<4x4xf32> to vector<1x1xf32>
    %133 = vector.broadcast %132 : vector<1x1xf32> to vector<8x2xf32>
    %134 = arith.mulf %37, %133 : vector<8x2xf32>
    %135 = arith.addf %131, %134 : vector<8x2xf32>
    %136 = vector.extract_strided_slice %31 {offsets = [3, 1], sizes = [1, 1], strides = [1, 1]} : vector<4x4xf32> to vector<1x1xf32>
    %137 = vector.broadcast %136 : vector<1x1xf32> to vector<8x2xf32>
    %138 = arith.mulf %41, %137 : vector<8x2xf32>
    %139 = arith.addf %135, %138 : vector<8x2xf32>
    %140 = vector.extract_strided_slice %31 {offsets = [3, 2], sizes = [1, 1], strides = [1, 1]} : vector<4x4xf32> to vector<1x1xf32>
    %141 = vector.broadcast %140 : vector<1x1xf32> to vector<8x2xf32>
    %142 = arith.mulf %45, %141 : vector<8x2xf32>
    %143 = arith.addf %139, %142 : vector<8x2xf32>
    %144 = vector.extract_strided_slice %31 {offsets = [3, 3], sizes = [1, 1], strides = [1, 1]} : vector<4x4xf32> to vector<1x1xf32>
    %145 = vector.broadcast %144 : vector<1x1xf32> to vector<8x2xf32>
    %146 = arith.mulf %49, %145 : vector<8x2xf32>
    %147 = arith.addf %143, %146 : vector<8x2xf32>
    %cst_30 = arith.constant dense<0.000000e+00> : vector<16x2xf32>
    %148 = tpu.matmul %1, %147, %cst_30 {dimension_numbers = #tpu.dot_dimension_numbers<[1], [0], [0], [1], [0, 0, 1, 1], [], []>} : vector<16x8xf32>, vector<8x2xf32>, vector<16x2xf32> -> vector<16x2xf32>
    %149 = vector.extract_strided_slice %33 {offsets = [3, 0], sizes = [1, 1], strides = [1, 1]} : vector<4x1xf32> to vector<1x1xf32>
    %150 = vector.broadcast %149 : vector<1x1xf32> to vector<16x1xf32>
    %151 = arith.mulf %2, %150 : vector<16x1xf32>
    %152 = vector.broadcast %151 : vector<16x1xf32> to vector<16x2xf32>
    %153 = arith.addf %148, %152 : vector<16x2xf32>
    %154 = vector.extract_strided_slice %6 {offsets = [0, 3], sizes = [1, 1], strides = [1, 1]} : vector<1x4xf32> to vector<1x1xf32>
    %155 = vector.broadcast %154 : vector<1x1xf32> to vector<16x2xf32>
    %156 = arith.addf %153, %155 : vector<16x2xf32>
    %c0_31 = arith.constant 0 : index
    %c0_32 = arith.constant 0 : index
    %157 = vector.load %arg13[%c0_31, %c0_32] : memref<16x2xf32, #tpu.memory_space<vmem>>, vector<16x2xf32>
    tpu.vector_store %arg13[%c0_31, %c0_32], %156 {strides = array<i32>} : memref<16x2xf32, #tpu.memory_space<vmem>>, vector<16x2xf32>,
    %c0_33 = arith.constant 0 : index
    %c0_34 = arith.constant 0 : index
    %158 = vector.load %arg6[%c0_33, %c0_34] : memref<1x4xf32, #tpu.memory_space<vmem>>, vector<1x4xf32>
    %cst_35 = arith.constant 0.000000e+00 : f32
    %159 = vector.broadcast %cst_35 : f32 to vector<1x2xf32>
    %c0_i32_36 = arith.constant 0 : i32
    %c16_i32 = arith.constant 16 : i32
    %160 = arith.addi %c0_i32_36, %c16_i32 : i32
    %c1_i32_37 = arith.constant 1 : i32
    %161:2 = scf.for %arg14 = %c0_i32_36 to %160 step %c1_i32_37 iter_args(%arg15 = %159, %arg16 = %159) -> (vector<1x2xf32>, vector<1x2xf32>)  : i32 {
      %162 = arith.index_cast %arg14 : i32 to index
      %c0_39 = arith.constant 0 : index
      %163 = vector.load %arg10[%162, %c0_39] : memref<16x2xf32, #tpu.memory_space<vmem>>, vector<1x2xf32>
      %164 = vector.extract_strided_slice %158 {offsets = [0, 0], sizes = [1, 1], strides = [1, 1]} : vector<1x4xf32> to vector<1x1xf32>
      %165 = vector.broadcast %164 : vector<1x1xf32> to vector<1x2xf32>
      %166 = arith.mulf %165, %arg15 : vector<1x2xf32>
      %167 = arith.addf %163, %166 : vector<1x2xf32>
      %168 = arith.index_cast %arg14 : i32 to index
      %c0_40 = arith.constant 0 : index
      %169 = vector.load %arg11[%168, %c0_40] : memref<16x2xf32, #tpu.memory_space<vmem>>, vector<1x2xf32>
      %170 = vector.extract_strided_slice %158 {offsets = [0, 1], sizes = [1, 1], strides = [1, 1]} : vector<1x4xf32> to vector<1x1xf32>
      %171 = vector.broadcast %170 : vector<1x1xf32> to vector<1x2xf32>
      %172 = arith.mulf %171, %arg15 : vector<1x2xf32>
      %173 = arith.addf %169, %172 : vector<1x2xf32>
      %174 = arith.index_cast %arg14 : i32 to index
      %c0_41 = arith.constant 0 : index
      %175 = vector.load %arg12[%174, %c0_41] : memref<16x2xf32, #tpu.memory_space<vmem>>, vector<1x2xf32>
      %176 = vector.extract_strided_slice %158 {offsets = [0, 2], sizes = [1, 1], strides = [1, 1]} : vector<1x4xf32> to vector<1x1xf32>
      %177 = vector.broadcast %176 : vector<1x1xf32> to vector<1x2xf32>
      %178 = arith.mulf %177, %arg15 : vector<1x2xf32>
      %179 = arith.addf %175, %178 : vector<1x2xf32>
      %180 = arith.index_cast %arg14 : i32 to index
      %c0_42 = arith.constant 0 : index
      %181 = vector.load %arg13[%180, %c0_42] : memref<16x2xf32, #tpu.memory_space<vmem>>, vector<1x2xf32>
      %182 = vector.extract_strided_slice %158 {offsets = [0, 3], sizes = [1, 1], strides = [1, 1]} : vector<1x4xf32> to vector<1x1xf32>
      %183 = vector.broadcast %182 : vector<1x1xf32> to vector<1x2xf32>
      %184 = arith.mulf %183, %arg15 : vector<1x2xf32>
      %185 = arith.addf %181, %184 : vector<1x2xf32>
      %cst_43 = arith.constant 0.000000e+00 : f32
      %186 = vector.broadcast %cst_43 : f32 to vector<1x2xf32>
      %187 = arith.subf %186, %167 : vector<1x2xf32>
      %188 = math.exp %187 : vector<1x2xf32>
      %cst_44 = arith.constant 1.000000e+00 : f32
      %189 = vector.broadcast %cst_44 : f32 to vector<1x2xf32>
      %190 = arith.addf %189, %188 : vector<1x2xf32>
      %cst_45 = arith.constant 1.000000e+00 : f32
      %191 = vector.broadcast %cst_45 : f32 to vector<1x2xf32>
      %192 = arith.divf %191, %190 : vector<1x2xf32>
      %cst_46 = arith.constant 0.000000e+00 : f32
      %193 = vector.broadcast %cst_46 : f32 to vector<1x2xf32>
      %194 = arith.subf %193, %173 : vector<1x2xf32>
      %195 = math.exp %194 : vector<1x2xf32>
      %cst_47 = arith.constant 1.000000e+00 : f32
      %196 = vector.broadcast %cst_47 : f32 to vector<1x2xf32>
      %197 = arith.addf %196, %195 : vector<1x2xf32>
      %cst_48 = arith.constant 1.000000e+00 : f32
      %198 = vector.broadcast %cst_48 : f32 to vector<1x2xf32>
      %199 = arith.divf %198, %197 : vector<1x2xf32>
      %200 = math.tanh %179 : vector<1x2xf32>
      %cst_49 = arith.constant 0.000000e+00 : f32
      %201 = vector.broadcast %cst_49 : f32 to vector<1x2xf32>
      %202 = arith.subf %201, %185 : vector<1x2xf32>
      %203 = math.exp %202 : vector<1x2xf32>
      %cst_50 = arith.constant 1.000000e+00 : f32
      %204 = vector.broadcast %cst_50 : f32 to vector<1x2xf32>
      %205 = arith.addf %204, %203 : vector<1x2xf32>
      %cst_51 = arith.constant 1.000000e+00 : f32
      %206 = vector.broadcast %cst_51 : f32 to vector<1x2xf32>
      %207 = arith.divf %206, %205 : vector<1x2xf32>
      %208 = arith.mulf %199, %arg16 : vector<1x2xf32>
      %209 = arith.mulf %192, %200 : vector<1x2xf32>
      %210 = arith.addf %208, %209 : vector<1x2xf32>
      %211 = math.tanh %210 : vector<1x2xf32>
      %212 = arith.mulf %207, %211 : vector<1x2xf32>
      %213 = arith.index_cast %arg14 : i32 to index
      %c0_52 = arith.constant 0 : index
      %214 = vector.load %arg9[%213, %c0_52] : memref<16x2xf32, #tpu.memory_space<vmem>>, vector<1x2xf32>
      tpu.vector_store %arg9[%213, %c0_52], %212 {strides = array<i32>} : memref<16x2xf32, #tpu.memory_space<vmem>>, vector<1x2xf32>,
      scf.yield %212, %210 : vector<1x2xf32>, vector<1x2xf32>
    }
    %c16_i32_38 = arith.constant 16 : i32
    return
  }
  func.func @transform_0(%arg0: i32) -> (i32, i32) {
    %c0_i32 = arith.constant 0 : i32
    %c0_i32_0 = arith.constant 0 : i32
    return %c0_i32, %arg0 : i32, i32
  }
  func.func @transform_1(%arg0: i32) -> (i32, i32) {
    %c0_i32 = arith.constant 0 : i32
    %c0_i32_0 = arith.constant 0 : i32
    %c0_i32_1 = arith.constant 0 : i32
    return %c0_i32, %c0_i32_0 : i32, i32
  }
  func.func @transform_2(%arg0: i32) -> (i32, i32) {
    %c0_i32 = arith.constant 0 : i32
    %c0_i32_0 = arith.constant 0 : i32
    %c0_i32_1 = arith.constant 0 : i32
    return %c0_i32, %c0_i32_0 : i32, i32
  }
  func.func @transform_3(%arg0: i32) -> (i32, i32) {
    %c0_i32 = arith.constant 0 : i32
    %c0_i32_0 = arith.constant 0 : i32
    %c0_i32_1 = arith.constant 0 : i32
    return %c0_i32, %c0_i32_0 : i32, i32
  }
  func.func @transform_4(%arg0: i32) -> (i32, i32) {
    %c0_i32 = arith.constant 0 : i32
    %c0_i32_0 = arith.constant 0 : i32
    %c0_i32_1 = arith.constant 0 : i32
    return %c0_i32, %c0_i32_0 : i32, i32
  }
  func.func @transform_5(%arg0: i32) -> (i32, i32) {
    %c0_i32 = arith.constant 0 : i32
    %c0_i32_0 = arith.constant 0 : i32
    %c0_i32_1 = arith.constant 0 : i32
    return %c0_i32, %c0_i32_0 : i32, i32
  }
  func.func @transform_6(%arg0: i32) -> (i32, i32) {
    %c0_i32 = arith.constant 0 : i32
    %c0_i32_0 = arith.constant 0 : i32
    %c0_i32_1 = arith.constant 0 : i32
    return %c0_i32, %c0_i32_0 : i32, i32
  }
  func.func @transform_7(%arg0: i32) -> (i32, i32) {
    %c0_i32 = arith.constant 0 : i32
    %c0_i32_0 = arith.constant 0 : i32
    %c0_i32_1 = arith.constant 0 : i32
    return %c0_i32, %c0_i32_0 : i32, i32
  }
  func.func @transform_8(%arg0: i32) -> (i32, i32) {
    %c0_i32 = arith.constant 0 : i32
    %c0_i32_0 = arith.constant 0 : i32
    return %c0_i32, %arg0 : i32, i32
  }
}

</mosaic_0001>

<llo_original>
// kernel: tpu_custom_call.1
$region0: #{tpu_custom_call.1}
  #allocation0 [shape = 'u32[]', space=smem, size = 0x4, offset = 0x4, fixed_abs, tag = 'smem constant byte address 0x4 - core index']
  #allocation1 [shape = 'u32[144,128]{1,0:T(1,128)}', space=vmem, size = 0x12000, scoped, tag = 'internal scratch']
  #allocation2 [shape = 'f32[16,2]{1,0:T(8,128)}', space=vmem, size = 0x2000, scoped, tag = 'scratch operand']
  #allocation3 [shape = 'f32[16,2]{1,0:T(8,128)}', space=vmem, size = 0x2000, scoped, tag = 'scratch operand']
  #allocation4 [shape = 'f32[16,2]{1,0:T(8,128)}', space=vmem, size = 0x2000, scoped, tag = 'scratch operand']
  #allocation5 [shape = 'f32[16,2]{1,0:T(8,128)}', space=vmem, size = 0x2000, scoped, tag = 'scratch operand']
  %s0 = inlined_call_operand.vmem [shape: s32[8,2], index: 0, kind: input, shape index: {}]
  %s1 = inlined_call_operand.vmem [shape: f32[4,4], index: 1, kind: input, shape index: {}]
  %s2 = inlined_call_operand.vmem [shape: f32[16,8], index: 2, kind: input, shape index: {}]
  %s3 = inlined_call_operand.vmem [shape: f32[16,1], index: 3, kind: input, shape index: {}]
  %s4 = inlined_call_operand.vmem [shape: f32[4,4], index: 4, kind: input, shape index: {}]
  %s5 = inlined_call_operand.vmem [shape: f32[1,4], index: 5, kind: input, shape index: {}]
  %s6 = inlined_call_operand.vmem [shape: f32[1,4], index: 6, kind: input, shape index: {}]
  %s7 = inlined_call_operand.vmem [shape: f32[1,4], index: 7, kind: input, shape index: {}]
  %s8 = inlined_call_operand.vmem [shape: f32[16,2], index: 8, kind: output, shape index: {}]
  %s9 = sld [smem:[#allocation0]]
  $region49: #{tpu_custom_call.1} parent=0
    _
  %s11 = ssub.s32 1, %s9
  %s12 = scalar_select 0, %s11, %s9
  // Predicated region
  $region2: #{tpu_custom_call.1} parent=0 // pred_check
    _
  $region3: #{tpu_custom_call.1} parent=0 // pred_check_branch
    %14 = sbr.rel (0) target = $region5
  $region4: #{tpu_custom_call.1} parent=0 // pred_region
    _
  $region5: #{tpu_custom_call.1} parent=0 // pred_fallthru
    _
  // Predicated region
  $region6: #{tpu_custom_call.1} parent=0 // pred_check
    _
  $region7: #{tpu_custom_call.1} parent=0 // pred_check_branch
    %16 = sbr.rel (0) target = $region9
  $region8: #{tpu_custom_call.1} parent=0 // pred_region
    _
  $region9: #{tpu_custom_call.1} parent=0 // pred_fallthru
    _
  // Predicated region
  $region10: #{tpu_custom_call.1} parent=0 // pred_check
    _
  $region11: #{tpu_custom_call.1} parent=0 // pred_check_branch
    %18 = sbr.rel (0) target = $region13
  $region12: #{tpu_custom_call.1} parent=0 // pred_region
    _
  $region13: #{tpu_custom_call.1} parent=0 // pred_fallthru
    _
  // Predicated region
  $region14: #{tpu_custom_call.1} parent=0 // pred_check
    _
  $region15: #{tpu_custom_call.1} parent=0 // pred_check_branch
    %20 = sbr.rel (0) target = $region17
  $region16: #{tpu_custom_call.1} parent=0 // pred_region
    _
  $region17: #{tpu_custom_call.1} parent=0 // pred_fallthru
    _
  // Predicated region
  $region18: #{tpu_custom_call.1} parent=0 // pred_check
    _
  $region19: #{tpu_custom_call.1} parent=0 // pred_check_branch
    %22 = sbr.rel (0) target = $region21
  $region20: #{tpu_custom_call.1} parent=0 // pred_region
    _
  $region21: #{tpu_custom_call.1} parent=0 // pred_fallthru
    _
  // Predicated region
  $region22: #{tpu_custom_call.1} parent=0 // pred_check
    _
  $region23: #{tpu_custom_call.1} parent=0 // pred_check_branch
    %24 = sbr.rel (0) target = $region25
  $region24: #{tpu_custom_call.1} parent=0 // pred_region
    _
  $region25: #{tpu_custom_call.1} parent=0 // pred_fallthru
    _
  // Predicated region
  $region26: #{tpu_custom_call.1} parent=0 // pred_check
    _
  $region27: #{tpu_custom_call.1} parent=0 // pred_check_branch
    %26 = sbr.rel (0) target = $region29
  $region28: #{tpu_custom_call.1} parent=0 // pred_region
    _
  $region29: #{tpu_custom_call.1} parent=0 // pred_fallthru
    _
  // Predicated region
  $region30: #{tpu_custom_call.1} parent=0 // pred_check
    _
  $region31: #{tpu_custom_call.1} parent=0 // pred_check_branch
    %28 = sbr.rel (0) target = $region33
  $region32: #{tpu_custom_call.1} parent=0 // pred_region
    _
  $region33: #{tpu_custom_call.1} parent=0 // pred_fallthru
    _
  %v29 = vld [vmem:[%s0] sm:$0xff]
  %v30 = vld [vmem:[%s2] sm:$0xff]
  %v31 = vld [vmem:[%s2 + $0x8] sm:$0xff]
  %v32 = vld [vmem:[%s3] sm:$0xff]
  %v33 = vld [vmem:[%s3 + $0x8] sm:$0xff]
  %v34 = vld [vmem:[%s4] sm:$0xf]
  %v35 = vld [vmem:[%s6] sm:$0x1]
  %v36 = vld [vmem:[%s7] sm:$0x1]
  %v37 = vadd.f32 %v35, %v36
  %v38 = vld [vmem:[%s1] sm:$0x1]
  %40 = vset.pattern.permute.xlu0 0
  %41 = vperm.xlu0 %40, %v34
  %v42 = vpop.permute.xlu0 %41
  %v44 = vlaneseq
  %v45 = vshrl.u32 %v44, 7
  %v46 = vsub.s32 0, %v45
  %v47 = vrot.slane %v38, %v46
  %v48 = vmul.f32 %v42, %v47
  %v49 = vadd.f32 %v48, 0.0
  %v50 = vld [vmem:[%s1 + $0x1] sm:$0x1]
  %51 = vset.pattern.permute.xlu0 1
  %52 = vperm.xlu0 %51, %v34
  %v53 = vpop.permute.xlu0 %52
  %v55 = vlaneseq
  %v56 = vshrl.u32 %v55, 7
  %v57 = vsub.s32 0, %v56
  %v58 = vrot.slane %v50, %v57
  %v59 = vmul.f32 %v53, %v58
  %v60 = vadd.f32 %v49, %v59
  %v61 = vld [vmem:[%s1 + $0x2] sm:$0x1]
  %62 = vset.pattern.permute.xlu0 2
  %63 = vperm.xlu0 %62, %v34
  %v64 = vpop.permute.xlu0 %63
  %v66 = vlaneseq
  %v67 = vshrl.u32 %v66, 7
  %v68 = vsub.s32 0, %v67
  %v69 = vrot.slane %v61, %v68
  %v70 = vmul.f32 %v64, %v69
  %v71 = vadd.f32 %v60, %v70
  %v72 = vld [vmem:[%s1 + $0x3] sm:$0x1]
  %73 = vset.pattern.permute.xlu0 3
  %74 = vperm.xlu0 %73, %v34
  %v75 = vpop.permute.xlu0 %74
  %v77 = vlaneseq
  %v78 = vshrl.u32 %v77, 7
  %v79 = vsub.s32 0, %v78
  %v80 = vrot.slane %v72, %v79
  %v81 = vmul.f32 %v75, %v80
  %v82 = vadd.f32 %v71, %v81
  %vm83 = vcmask 27648
  %v84 = vsel %vm83, %v34, 0.0
  %85 = vadd.xlane.f32.xlu0 %v84
  %v86 = vpop.xlane.xlu0 %85
  %vm87 = vcmp.eq.s32.totalorder %v29, 0
  %v88 = vsel %vm87, 1, 0
  %v89 = vcvt.s32.f32 %v88
  %vm90 = vcmp.eq.s32.totalorder %v29, 1
  %v91 = vsel %vm90, 1, 0
  %v92 = vcvt.s32.f32 %v91
  %vm93 = vcmp.eq.s32.totalorder %v29, 2
  %v94 = vsel %vm93, 1, 0
  %v95 = vcvt.s32.f32 %v94
  %vm96 = vcmp.eq.s32.totalorder %v29, 3
  %v97 = vsel %vm96, 1, 0
  %v98 = vcvt.s32.f32 %v97
  %s100 = vtos %v82
  %v101 = vstv %s100
  %v103 = vmul.f32 %v89, %v101
  %v104 = vadd.f32 %v103, 0.0
  %105 = vrot.lane.b32.xlu0 %v82, 127
  %v106 = vpop.permute.xlu0 %105
  %s107 = vtos %v106
  %v108 = vstv %s107
  %v110 = vmul.f32 %v92, %v108
  %v111 = vadd.f32 %v104, %v110
  %112 = vrot.lane.b32.xlu0 %v82, 126
  %v113 = vpop.permute.xlu0 %112
  %s114 = vtos %v113
  %v115 = vstv %s114
  %v117 = vmul.f32 %v95, %v115
  %v118 = vadd.f32 %v111, %v117
  %119 = vrot.lane.b32.xlu0 %v82, 125
  %v120 = vpop.permute.xlu0 %119
  %s121 = vtos %v120
  %v122 = vstv %s121
  %v124 = vmul.f32 %v98, %v122
  %v125 = vadd.f32 %v118, %v124
  %v126 = vlaneseq
  %v127 = vshrl.u32 %v126, 7
  %v128 = vsub.s32 0, %v127
  %v129 = vrot.slane %v86, %v128
  %v130 = vmul.f32 %v32, %v129
  %v131 = vmul.f32 %v33, %v129
  %133 = vset.pattern.permute.xlu0 0
  %134 = vperm.xlu0 %133, %v130
  %v135 = vpop.permute.xlu0 %134
  %138 = vset.pattern.permute.xlu0 0
  %139 = vperm.xlu0 %138, %v131
  %v140 = vpop.permute.xlu0 %139
  %vm142 = vcmask 64512
  %v144 = vsel %vm142, %v30, 0
  %v147 = vsel %vm142, %v31, 0
  %149 = vmatprep.subr.mxu0 0.0
  %150 = vmatpush1.msra.mxu0 0.0
  %151 = vmatprep.subr.mxu0 0.0
  %152 = vmatpush1.msra.mxu0 0.0
  %153 = vmatprep.subr.mxu0 0.0
  %154 = vmatpush1.msra.mxu0 0.0
  %155 = vmatprep.subr.mxu0 0.0
  %156 = vmatpush1.msra.mxu0 0.0
  %157 = vmatprep.subr.mxu0 0.0
  %158 = vmatpush1.msra.mxu0 0.0
  %159 = vmatprep.subr.mxu0 0.0
  %160 = vmatpush1.msra.mxu0 0.0
  %161 = vmatprep.subr.mxu0 0.0
  %162 = vmatpush1.msra.mxu0 0.0
  %163 = vmatprep.subr.mxu0 0.0
  %164 = vmatpush1.msra.mxu0 0.0
  %165 = vmatprep.subr.mxu0 0.0
  %166 = vmatpush1.msra.mxu0 0.0
  %167 = vmatprep.subr.mxu0 0.0
  %168 = vmatpush1.msra.mxu0 0.0
  %169 = vmatprep.subr.mxu0 0.0
  %170 = vmatpush1.msra.mxu0 0.0
  %171 = vmatprep.subr.mxu0 0.0
  %172 = vmatpush1.msra.mxu0 0.0
  %173 = vmatprep.subr.mxu0 0.0
  %174 = vmatpush1.msra.mxu0 0.0
  %175 = vmatprep.subr.mxu0 0.0
  %176 = vmatpush1.msra.mxu0 0.0
  %177 = vmatprep.subr.mxu0 0.0
  %178 = vmatpush1.msra.mxu0 0.0
  %179 = vmatprep.subr.mxu0 0.0
  %180 = vmatpush1.msra.mxu0 %v125
  %181 = vmatprep.subr.mxu0 0.0
  %182 = vmatpush2.msra.mxu0 0.0
  %183 = vmatprep.subr.mxu0 0.0
  %184 = vmatpush2.msra.mxu0 0.0
  %185 = vmatprep.subr.mxu0 0.0
  %186 = vmatpush2.msra.mxu0 0.0
  %187 = vmatprep.subr.mxu0 0.0
  %188 = vmatpush2.msra.mxu0 0.0
  %189 = vmatprep.subr.mxu0 0.0
  %190 = vmatpush2.msra.mxu0 0.0
  %191 = vmatprep.subr.mxu0 0.0
  %192 = vmatpush2.msra.mxu0 0.0
  %193 = vmatprep.subr.mxu0 0.0
  %194 = vmatpush2.msra.mxu0 0.0
  %195 = vmatprep.subr.mxu0 0.0
  %196 = vmatpush2.msra.mxu0 0.0
  %197 = vmatprep.subr.mxu0 0.0
  %198 = vmatpush2.msra.mxu0 0.0
  %199 = vmatprep.subr.mxu0 0.0
  %200 = vmatpush2.msra.mxu0 0.0
  %201 = vmatprep.subr.mxu0 0.0
  %202 = vmatpush2.msra.mxu0 0.0
  %203 = vmatprep.subr.mxu0 0.0
  %204 = vmatpush2.msra.mxu0 0.0
  %205 = vmatprep.subr.mxu0 0.0
  %206 = vmatpush2.msra.mxu0 0.0
  %207 = vmatprep.subr.mxu0 0.0
  %208 = vmatpush2.msra.mxu0 0.0
  %209 = vmatprep.subr.mxu0 0.0
  %210 = vmatpush2.msra.mxu0 0.0
  %211 = vmatprep.subr.mxu0 0.0
  %212 = vmatpush2.msra.mxu0 0.0
  %213 = vmatprep.mubr.f32.mxu0 0.0
  %214 = vmatmul.mubr.f32.gmra.mxu0 %v144
  %v215 = vpop.f32.mrf.mxu0
  %v216 = vadd.f32 %v135, %v215
  %v217 = vpop.f32.mrf.mxu0
  %218 = vmatprep.mubr.f32.mxu0 0.0
  %219 = vmatmul.mubr.f32.gmra.mxu0 %v147
  %v220 = vpop.f32.mrf.mxu0
  %v221 = vadd.f32 %v140, %v220
  %v222 = vpop.f32.mrf.mxu0
  %223 = vdwg.mxu0
  %v225 = vlaneseq
  %v226 = vshrl.u32 %v225, 7
  %v227 = vsub.s32 0, %v226
  %v228 = vrot.slane %v37, %v227
  %229 = vset.pattern.permute.xlu0 0
  %230 = vperm.xlu0 %229, %v228
  %v231 = vpop.permute.xlu0 %230
  %v233 = vadd.f32 %v216, %v231
  %v234 = vadd.f32 %v221, %v231
  %vm235 = vcmask 15360
  %236 = vst.msk [vmem:[#allocation2] sm:$0xff] %vm235, %v233
  %237 = vst.msk [vmem:[#allocation2 + $0x8] sm:$0xff] %vm235, %v234
  %v238 = vrot.slane %v82, 1
  %s239 = vtos %v238
  %v240 = vstv %s239
  %v242 = vmul.f32 %v89, %v240
  %v243 = vadd.f32 %v242, 0.0
  %244 = vrot.lane.b32.xlu0 %v238, 127
  %v245 = vpop.permute.xlu0 %244
  %s246 = vtos %v245
  %v247 = vstv %s246
  %v249 = vmul.f32 %v92, %v247
  %v250 = vadd.f32 %v243, %v249
  %251 = vrot.lane.b32.xlu0 %v238, 126
  %v252 = vpop.permute.xlu0 %251
  %s253 = vtos %v252
  %v254 = vstv %s253
  %v256 = vmul.f32 %v95, %v254
  %v257 = vadd.f32 %v250, %v256
  %258 = vrot.lane.b32.xlu0 %v238, 125
  %v259 = vpop.permute.xlu0 %258
  %s260 = vtos %v259
  %v261 = vstv %s260
  %v263 = vmul.f32 %v98, %v261
  %v264 = vadd.f32 %v257, %v263
  %v265 = vlaneseq
  %v266 = vshrl.u32 %v265, 7
  %v267 = vsub.s32 1, %v266
  %v268 = vrot.slane %v86, %v267
  %v269 = vmul.f32 %v32, %v268
  %v270 = vmul.f32 %v33, %v268
  %272 = vset.pattern.permute.xlu0 0
  %273 = vperm.xlu0 %272, %v269
  %v274 = vpop.permute.xlu0 %273
  %277 = vset.pattern.permute.xlu0 0
  %278 = vperm.xlu0 %277, %v270
  %v279 = vpop.permute.xlu0 %278
  %281 = vmatprep.subr.mxu0 0.0
  %282 = vmatpush1.msra.mxu0 0.0
  %283 = vmatprep.subr.mxu0 0.0
  %284 = vmatpush1.msra.mxu0 0.0
  %285 = vmatprep.subr.mxu0 0.0
  %286 = vmatpush1.msra.mxu0 0.0
  %287 = vmatprep.subr.mxu0 0.0
  %288 = vmatpush1.msra.mxu0 0.0
  %289 = vmatprep.subr.mxu0 0.0
  %290 = vmatpush1.msra.mxu0 0.0
  %291 = vmatprep.subr.mxu0 0.0
  %292 = vmatpush1.msra.mxu0 0.0
  %293 = vmatprep.subr.mxu0 0.0
  %294 = vmatpush1.msra.mxu0 0.0
  %295 = vmatprep.subr.mxu0 0.0
  %296 = vmatpush1.msra.mxu0 0.0
  %297 = vmatprep.subr.mxu0 0.0
  %298 = vmatpush1.msra.mxu0 0.0
  %299 = vmatprep.subr.mxu0 0.0
  %300 = vmatpush1.msra.mxu0 0.0
  %301 = vmatprep.subr.mxu0 0.0
  %302 = vmatpush1.msra.mxu0 0.0
  %303 = vmatprep.subr.mxu0 0.0
  %304 = vmatpush1.msra.mxu0 0.0
  %305 = vmatprep.subr.mxu0 0.0
  %306 = vmatpush1.msra.mxu0 0.0
  %307 = vmatprep.subr.mxu0 0.0
  %308 = vmatpush1.msra.mxu0 0.0
  %309 = vmatprep.subr.mxu0 0.0
  %310 = vmatpush1.msra.mxu0 0.0
  %311 = vmatprep.subr.mxu0 0.0
  %312 = vmatpush1.msra.mxu0 %v264
  %313 = vmatprep.subr.mxu0 0.0
  %314 = vmatpush2.msra.mxu0 0.0
  %315 = vmatprep.subr.mxu0 0.0
  %316 = vmatpush2.msra.mxu0 0.0
  %317 = vmatprep.subr.mxu0 0.0
  %318 = vmatpush2.msra.mxu0 0.0
  %319 = vmatprep.subr.mxu0 0.0
  %320 = vmatpush2.msra.mxu0 0.0
  %321 = vmatprep.subr.mxu0 0.0
  %322 = vmatpush2.msra.mxu0 0.0
  %323 = vmatprep.subr.mxu0 0.0
  %324 = vmatpush2.msra.mxu0 0.0
  %325 = vmatprep.subr.mxu0 0.0
  %326 = vmatpush2.msra.mxu0 0.0
  %327 = vmatprep.subr.mxu0 0.0
  %328 = vmatpush2.msra.mxu0 0.0
  %329 = vmatprep.subr.mxu0 0.0
  %330 = vmatpush2.msra.mxu0 0.0
  %331 = vmatprep.subr.mxu0 0.0
  %332 = vmatpush2.msra.mxu0 0.0
  %333 = vmatprep.subr.mxu0 0.0
  %334 = vmatpush2.msra.mxu0 0.0
  %335 = vmatprep.subr.mxu0 0.0
  %336 = vmatpush2.msra.mxu0 0.0
  %337 = vmatprep.subr.mxu0 0.0
  %338 = vmatpush2.msra.mxu0 0.0
  %339 = vmatprep.subr.mxu0 0.0
  %340 = vmatpush2.msra.mxu0 0.0
  %341 = vmatprep.subr.mxu0 0.0
  %342 = vmatpush2.msra.mxu0 0.0
  %343 = vmatprep.subr.mxu0 0.0
  %344 = vmatpush2.msra.mxu0 0.0
  %345 = vmatprep.mubr.f32.mxu0 0.0
  %346 = vmatmul.mubr.f32.gmra.mxu0 %v144
  %v347 = vpop.f32.mrf.mxu0
  %v348 = vadd.f32 %v274, %v347
  %v349 = vpop.f32.mrf.mxu0
  %350 = vmatprep.mubr.f32.mxu0 0.0
  %351 = vmatmul.mubr.f32.gmra.mxu0 %v147
  %v352 = vpop.f32.mrf.mxu0
  %v353 = vadd.f32 %v279, %v352
  %v354 = vpop.f32.mrf.mxu0
  %355 = vdwg.mxu0
  %356 = vset.pattern.permute.xlu0 1
  %357 = vperm.xlu0 %356, %v228
  %v358 = vpop.permute.xlu0 %357
  %v360 = vadd.f32 %v348, %v358
  %v361 = vadd.f32 %v353, %v358
  %362 = vst.msk [vmem:[#allocation3] sm:$0xff] %vm235, %v360
  %363 = vst.msk [vmem:[#allocation3 + $0x8] sm:$0xff] %vm235, %v361
  %v364 = vrot.slane %v82, 2
  %s365 = vtos %v364
  %v366 = vstv %s365
  %v368 = vmul.f32 %v89, %v366
  %v369 = vadd.f32 %v368, 0.0
  %370 = vrot.lane.b32.xlu0 %v364, 127
  %v371 = vpop.permute.xlu0 %370
  %s372 = vtos %v371
  %v373 = vstv %s372
  %v375 = vmul.f32 %v92, %v373
  %v376 = vadd.f32 %v369, %v375
  %377 = vrot.lane.b32.xlu0 %v364, 126
  %v378 = vpop.permute.xlu0 %377
  %s379 = vtos %v378
  %v380 = vstv %s379
  %v382 = vmul.f32 %v95, %v380
  %v383 = vadd.f32 %v376, %v382
  %384 = vrot.lane.b32.xlu0 %v364, 125
  %v385 = vpop.permute.xlu0 %384
  %s386 = vtos %v385
  %v387 = vstv %s386
  %v389 = vmul.f32 %v98, %v387
  %v390 = vadd.f32 %v383, %v389
  %v391 = vlaneseq
  %v392 = vshrl.u32 %v391, 7
  %v393 = vsub.s32 2, %v392
  %v394 = vrot.slane %v86, %v393
  %v395 = vmul.f32 %v32, %v394
  %v396 = vmul.f32 %v33, %v394
  %398 = vset.pattern.permute.xlu0 0
  %399 = vperm.xlu0 %398, %v395
  %v400 = vpop.permute.xlu0 %399
  %403 = vset.pattern.permute.xlu0 0
  %404 = vperm.xlu0 %403, %v396
  %v405 = vpop.permute.xlu0 %404
  %407 = vmatprep.subr.mxu0 0.0
  %408 = vmatpush1.msra.mxu0 0.0
  %409 = vmatprep.subr.mxu0 0.0
  %410 = vmatpush1.msra.mxu0 0.0
  %411 = vmatprep.subr.mxu0 0.0
  %412 = vmatpush1.msra.mxu0 0.0
  %413 = vmatprep.subr.mxu0 0.0
  %414 = vmatpush1.msra.mxu0 0.0
  %415 = vmatprep.subr.mxu0 0.0
  %416 = vmatpush1.msra.mxu0 0.0
  %417 = vmatprep.subr.mxu0 0.0
  %418 = vmatpush1.msra.mxu0 0.0
  %419 = vmatprep.subr.mxu0 0.0
  %420 = vmatpush1.msra.mxu0 0.0
  %421 = vmatprep.subr.mxu0 0.0
  %422 = vmatpush1.msra.mxu0 0.0
  %423 = vmatprep.subr.mxu0 0.0
  %424 = vmatpush1.msra.mxu0 0.0
  %425 = vmatprep.subr.mxu0 0.0
  %426 = vmatpush1.msra.mxu0 0.0
  %427 = vmatprep.subr.mxu0 0.0
  %428 = vmatpush1.msra.mxu0 0.0
  %429 = vmatprep.subr.mxu0 0.0
  %430 = vmatpush1.msra.mxu0 0.0
  %431 = vmatprep.subr.mxu0 0.0
  %432 = vmatpush1.msra.mxu0 0.0
  %433 = vmatprep.subr.mxu0 0.0
  %434 = vmatpush1.msra.mxu0 0.0
  %435 = vmatprep.subr.mxu0 0.0
  %436 = vmatpush1.msra.mxu0 0.0
  %437 = vmatprep.subr.mxu0 0.0
  %438 = vmatpush1.msra.mxu0 %v390
  %439 = vmatprep.subr.mxu0 0.0
  %440 = vmatpush2.msra.mxu0 0.0
  %441 = vmatprep.subr.mxu0 0.0
  %442 = vmatpush2.msra.mxu0 0.0
  %443 = vmatprep.subr.mxu0 0.0
  %444 = vmatpush2.msra.mxu0 0.0
  %445 = vmatprep.subr.mxu0 0.0
  %446 = vmatpush2.msra.mxu0 0.0
  %447 = vmatprep.subr.mxu0 0.0
  %448 = vmatpush2.msra.mxu0 0.0
  %449 = vmatprep.subr.mxu0 0.0
  %450 = vmatpush2.msra.mxu0 0.0
  %451 = vmatprep.subr.mxu0 0.0
  %452 = vmatpush2.msra.mxu0 0.0
  %453 = vmatprep.subr.mxu0 0.0
  %454 = vmatpush2.msra.mxu0 0.0
  %455 = vmatprep.subr.mxu0 0.0
  %456 = vmatpush2.msra.mxu0 0.0
  %457 = vmatprep.subr.mxu0 0.0
  %458 = vmatpush2.msra.mxu0 0.0
  %459 = vmatprep.subr.mxu0 0.0
  %460 = vmatpush2.msra.mxu0 0.0
  %461 = vmatprep.subr.mxu0 0.0
  %462 = vmatpush2.msra.mxu0 0.0
  %463 = vmatprep.subr.mxu0 0.0
  %464 = vmatpush2.msra.mxu0 0.0
  %465 = vmatprep.subr.mxu0 0.0
  %466 = vmatpush2.msra.mxu0 0.0
  %467 = vmatprep.subr.mxu0 0.0
  %468 = vmatpush2.msra.mxu0 0.0
  %469 = vmatprep.subr.mxu0 0.0
  %470 = vmatpush2.msra.mxu0 0.0
  %471 = vmatprep.mubr.f32.mxu0 0.0
  %472 = vmatmul.mubr.f32.gmra.mxu0 %v144
  %v473 = vpop.f32.mrf.mxu0
  %v474 = vadd.f32 %v400, %v473
  %v475 = vpop.f32.mrf.mxu0
  %476 = vmatprep.mubr.f32.mxu0 0.0
  %477 = vmatmul.mubr.f32.gmra.mxu0 %v147
  %v478 = vpop.f32.mrf.mxu0
  %v479 = vadd.f32 %v405, %v478
  %v480 = vpop.f32.mrf.mxu0
  %481 = vdwg.mxu0
  %482 = vset.pattern.permute.xlu0 2
  %483 = vperm.xlu0 %482, %v228
  %v484 = vpop.permute.xlu0 %483
  %v486 = vadd.f32 %v474, %v484
  %v487 = vadd.f32 %v479, %v484
  %488 = vst.msk [vmem:[#allocation4] sm:$0xff] %vm235, %v486
  %489 = vst.msk [vmem:[#allocation4 + $0x8] sm:$0xff] %vm235, %v487
  %v490 = vrot.slane %v82, 3
  %s491 = vtos %v490
  %v492 = vstv %s491
  %v494 = vmul.f32 %v89, %v492
  %v495 = vadd.f32 %v494, 0.0
  %496 = vrot.lane.b32.xlu0 %v490, 127
  %v497 = vpop.permute.xlu0 %496
  %s498 = vtos %v497
  %v499 = vstv %s498
  %v501 = vmul.f32 %v92, %v499
  %v502 = vadd.f32 %v495, %v501
  %503 = vrot.lane.b32.xlu0 %v490, 126
  %v504 = vpop.permute.xlu0 %503
  %s505 = vtos %v504
  %v506 = vstv %s505
  %v508 = vmul.f32 %v95, %v506
  %v509 = vadd.f32 %v502, %v508
  %510 = vrot.lane.b32.xlu0 %v490, 125
  %v511 = vpop.permute.xlu0 %510
  %s512 = vtos %v511
  %v513 = vstv %s512
  %v515 = vmul.f32 %v98, %v513
  %v516 = vadd.f32 %v509, %v515
  %v517 = vlaneseq
  %v518 = vshrl.u32 %v517, 7
  %v519 = vsub.s32 3, %v518
  %v520 = vrot.slane %v86, %v519
  %v521 = vmul.f32 %v32, %v520
  %v522 = vmul.f32 %v33, %v520
  %524 = vset.pattern.permute.xlu0 0
  %525 = vperm.xlu0 %524, %v521
  %v526 = vpop.permute.xlu0 %525
  %529 = vset.pattern.permute.xlu0 0
  %530 = vperm.xlu0 %529, %v522
  %v531 = vpop.permute.xlu0 %530
  %533 = vmatprep.subr.mxu0 0.0
  %534 = vmatpush1.msra.mxu0 0.0
  %535 = vmatprep.subr.mxu0 0.0
  %536 = vmatpush1.msra.mxu0 0.0
  %537 = vmatprep.subr.mxu0 0.0
  %538 = vmatpush1.msra.mxu0 0.0
  %539 = vmatprep.subr.mxu0 0.0
  %540 = vmatpush1.msra.mxu0 0.0
  %541 = vmatprep.subr.mxu0 0.0
  %542 = vmatpush1.msra.mxu0 0.0
  %543 = vmatprep.subr.mxu0 0.0
  %544 = vmatpush1.msra.mxu0 0.0
  %545 = vmatprep.subr.mxu0 0.0
  %546 = vmatpush1.msra.mxu0 0.0
  %547 = vmatprep.subr.mxu0 0.0
  %548 = vmatpush1.msra.mxu0 0.0
  %549 = vmatprep.subr.mxu0 0.0
  %550 = vmatpush1.msra.mxu0 0.0
  %551 = vmatprep.subr.mxu0 0.0
  %552 = vmatpush1.msra.mxu0 0.0
  %553 = vmatprep.subr.mxu0 0.0
  %554 = vmatpush1.msra.mxu0 0.0
  %555 = vmatprep.subr.mxu0 0.0
  %556 = vmatpush1.msra.mxu0 0.0
  %557 = vmatprep.subr.mxu0 0.0
  %558 = vmatpush1.msra.mxu0 0.0
  %559 = vmatprep.subr.mxu0 0.0
  %560 = vmatpush1.msra.mxu0 0.0
  %561 = vmatprep.subr.mxu0 0.0
  %562 = vmatpush1.msra.mxu0 0.0
  %563 = vmatprep.subr.mxu0 0.0
  %564 = vmatpush1.msra.mxu0 %v516
  %565 = vmatprep.subr.mxu0 0.0
  %566 = vmatpush2.msra.mxu0 0.0
  %567 = vmatprep.subr.mxu0 0.0
  %568 = vmatpush2.msra.mxu0 0.0
  %569 = vmatprep.subr.mxu0 0.0
  %570 = vmatpush2.msra.mxu0 0.0
  %571 = vmatprep.subr.mxu0 0.0
  %572 = vmatpush2.msra.mxu0 0.0
  %573 = vmatprep.subr.mxu0 0.0
  %574 = vmatpush2.msra.mxu0 0.0
  %575 = vmatprep.subr.mxu0 0.0
  %576 = vmatpush2.msra.mxu0 0.0
  %577 = vmatprep.subr.mxu0 0.0
  %578 = vmatpush2.msra.mxu0 0.0
  %579 = vmatprep.subr.mxu0 0.0
  %580 = vmatpush2.msra.mxu0 0.0
  %581 = vmatprep.subr.mxu0 0.0
  %582 = vmatpush2.msra.mxu0 0.0
  %583 = vmatprep.subr.mxu0 0.0
  %584 = vmatpush2.msra.mxu0 0.0
  %585 = vmatprep.subr.mxu0 0.0
  %586 = vmatpush2.msra.mxu0 0.0
  %587 = vmatprep.subr.mxu0 0.0
  %588 = vmatpush2.msra.mxu0 0.0
  %589 = vmatprep.subr.mxu0 0.0
  %590 = vmatpush2.msra.mxu0 0.0
  %591 = vmatprep.subr.mxu0 0.0
  %592 = vmatpush2.msra.mxu0 0.0
  %593 = vmatprep.subr.mxu0 0.0
  %594 = vmatpush2.msra.mxu0 0.0
  %595 = vmatprep.subr.mxu0 0.0
  %596 = vmatpush2.msra.mxu0 0.0
  %597 = vmatprep.mubr.f32.mxu0 0.0
  %598 = vmatmul.mubr.f32.gmra.mxu0 %v144
  %v599 = vpop.f32.mrf.mxu0
  %v600 = vadd.f32 %v526, %v599
  %v601 = vpop.f32.mrf.mxu0
  %602 = vmatprep.mubr.f32.mxu0 0.0
  %603 = vmatmul.mubr.f32.gmra.mxu0 %v147
  %v604 = vpop.f32.mrf.mxu0
  %v605 = vadd.f32 %v531, %v604
  %v606 = vpop.f32.mrf.mxu0
  %607 = vdwg.mxu0
  %608 = vset.pattern.permute.xlu0 3
  %609 = vperm.xlu0 %608, %v228
  %v610 = vpop.permute.xlu0 %609
  %v612 = vadd.f32 %v600, %v610
  %v613 = vadd.f32 %v605, %v610
  %614 = vst.msk [vmem:[#allocation5] sm:$0xff] %vm235, %v612
  %615 = vst.msk [vmem:[#allocation5 + $0x8] sm:$0xff] %vm235, %v613
  %v616 = vld [vmem:[%s5] sm:$0x1]
  loop: start=0, step=1, limit=16
  $region34: #{tpu_custom_call.1} parent=0 // loop_pre_header
    _
  $region35: #{tpu_custom_call.1} parent=0 // loop_header
    %s618 = sphi 0, %s622
    %p619 = scmp.ge.s32.totalorder %s618, 16
    %v623 = vphi 0.0, %v697
    %v624 = vphi 0.0, %v695
  $region36: #{tpu_custom_call.1} parent=0 // loop_header_branch
    %621 = sbr.rel (%p619) target = $region40
  $region37: #{tpu_custom_call.1} parent=0 // loop_body
    %s625 = scalar_lea.vmem [#allocation2], %s618
    %v626 = vld [vmem:[%s625] sm:$0x1]
    %628 = vset.pattern.permute.xlu0 0
    %629 = vperm.xlu0 %628, %v616
    %v630 = vpop.permute.xlu0 %629
    %v632 = vlaneseq
    %v633 = vshrl.u32 %v632, 7
    %v634 = vsub.s32 0, %v633
    %v635 = vrot.slane %v630, %v634
    %v636 = vmul.f32 %v635, %v623
    %v637 = vadd.f32 %v626, %v636
    %s638 = scalar_lea.vmem [#allocation3], %s618
    %v639 = vld [vmem:[%s638] sm:$0x1]
    %640 = vset.pattern.permute.xlu0 1
    %641 = vperm.xlu0 %640, %v616
    %v642 = vpop.permute.xlu0 %641
    %v644 = vlaneseq
    %v645 = vshrl.u32 %v644, 7
    %v646 = vsub.s32 0, %v645
    %v647 = vrot.slane %v642, %v646
    %v648 = vmul.f32 %v647, %v623
    %v649 = vadd.f32 %v639, %v648
    %s650 = scalar_lea.vmem [#allocation4], %s618
    %v651 = vld [vmem:[%s650] sm:$0x1]
    %652 = vset.pattern.permute.xlu0 2
    %653 = vperm.xlu0 %652, %v616
    %v654 = vpop.permute.xlu0 %653
    %v656 = vlaneseq
    %v657 = vshrl.u32 %v656, 7
    %v658 = vsub.s32 0, %v657
    %v659 = vrot.slane %v654, %v658
    %v660 = vmul.f32 %v659, %v623
    %v661 = vadd.f32 %v651, %v660
    %s662 = scalar_lea.vmem [#allocation5], %s618
    %v663 = vld [vmem:[%s662] sm:$0x1]
    %664 = vset.pattern.permute.xlu0 3
    %665 = vperm.xlu0 %664, %v616
    %v666 = vpop.permute.xlu0 %665
    %v668 = vlaneseq
    %v669 = vshrl.u32 %v668, 7
    %v670 = vsub.s32 0, %v669
    %v671 = vrot.slane %v666, %v670
    %v672 = vmul.f32 %v671, %v623
    %v673 = vadd.f32 %v663, %v672
    %v674 = vsub.f32 0.0, %v637
    %v675 = vmul.f32 %v674, 1.442695
    %v676 = vpow.pop %v675
    %v677 = vadd.f32 %v676, 1.0
    %v678 = vrcp.pop %v677
    %v679 = vmul.f32 1.0, %v678
    %v680 = vsub.f32 0.0, %v649
    %v681 = vmul.f32 %v680, 1.442695
    %v682 = vpow.pop %v681
    %v683 = vadd.f32 %v682, 1.0
    %v684 = vrcp.pop %v683
    %v685 = vmul.f32 1.0, %v684
    %v686 = vtanh.pop %v661
    %v687 = vsub.f32 0.0, %v673
    %v688 = vmul.f32 %v687, 1.442695
    %v689 = vpow.pop %v688
    %v690 = vadd.f32 %v689, 1.0
    %v691 = vrcp.pop %v690
    %v692 = vmul.f32 1.0, %v691
    %v693 = vmul.f32 %v685, %v624
    %v694 = vmul.f32 %v679, %v686
    %v695 = vadd.f32 %v693, %v694
    %v696 = vtanh.pop %v695
    %v697 = vmul.f32 %v692, %v696
    %s698 = scalar_lea.vmem %s8, %s618
    %vm699 = vcmask 8192
    %700 = vst.msk [vmem:[%s698] sm:$0x1] %vm699, %v697
  $region38: #{tpu_custom_call.1} parent=0 // loop_footer
    %s622 = sadd.s32 1, %s618
  $region39: #{tpu_custom_call.1} parent=0 // loop_footer_branch
    %617 = sbr.rel target = $region35
  $region40: #{tpu_custom_call.1} parent=0 // loop_exit
    _
  // Predicated region
  $region41: #{tpu_custom_call.1} parent=0 // pred_check
    _
  $region42: #{tpu_custom_call.1} parent=0 // pred_check_branch
    %702 = sbr.rel (0) target = $region44
  $region43: #{tpu_custom_call.1} parent=0 // pred_region
    _
  $region44: #{tpu_custom_call.1} parent=0 // pred_fallthru
    _
  // Predicated region
  $region45: #{tpu_custom_call.1} parent=0 // pred_check
    _
  $region46: #{tpu_custom_call.1} parent=0 // pred_check_branch
    %704 = sbr.rel (0) target = $region48
  $region47: #{tpu_custom_call.1} parent=0 // pred_region
    _
  $region48: #{tpu_custom_call.1} parent=0 // pred_fallthru
    _

</llo_original>
